<compile_context>
chip_gen: v6e
topology: v6e:2x2x1
jax: 0.10.0
libtpu: 0.0.40
codegen_flags: <defaults>
</compile_context>

<pallas_src>
import functools

import jax
import jax.numpy as jnp
from jax import lax
from jax.experimental import pallas as pl
from jax.experimental.pallas import tpu as pltpu


# ---------------------------------------------------------------------------
# Fused kernel: one grid step == one image, entirely in VMEM / registers.
# Layout: every activation is channel-major (C, H*W), spatial in lanes.
# ---------------------------------------------------------------------------

def _fused_inverted_residual_kernel(
    *refs, has_expand, use_res, stride, H, W, Ho, Wo, hidden):
  if has_expand:
    (x_ref, wet_ref, be_ref, wdt_ref, bd_ref, wp_ref, bp_ref, o_ref) = refs
  else:
    (x_ref, wdt_ref, bd_ref, wp_ref, bp_ref, o_ref) = refs

  HW = H * W
  x_cf = x_ref[0].astype(jnp.float32)               # (inp, HW), lane-dense

  # ---- 1x1 expand conv (BN scale pre-folded) + ReLU, channels-first ------
  if has_expand:
    h = jnp.dot(wet_ref[...], x_cf, preferred_element_type=jnp.float32)
    h = jnp.maximum(h + be_ref[...], 0.0)           # (hidden, HW)
  else:
    h = x_cf                                        # hidden == inp

  # ---- depthwise 3x3 conv (BN scale pre-folded) + ReLU -------------------
  # All taps act on the flattened spatial (lane) dim.  A shift by s gives
  # out[:, i] = h[:, i + s] with zero fill; row taps are shifts of +-W, column
  # taps are shifts of +-1 plus a column-boundary mask that kills the values
  # bleeding in from the adjacent row.
  def shift(a, s):
    if s == 0:
      return a
    z = jnp.zeros((a.shape[0], abs(s)), a.dtype)
    if s > 0:
      return jnp.concatenate([a[:, s:], z], axis=1)
    return jnp.concatenate([z, a[:, :s]], axis=1)

  wdt = wdt_ref[...]                                # (hidden, 9), loaded once
  rows = (shift(h, -W), h, shift(h, W))             # source rows y-1, y, y+1
  xx = lax.broadcasted_iota(jnp.int32, (1, HW), 1) % W   # column index per lane

  acc = jnp.zeros_like(h)
  for kw in range(3):
    # Sum the three row taps of this column offset first (shifts commute with
    # the per-channel weight multiply), then apply the single column shift.
    tmp = jnp.zeros_like(h)
    for kh in range(3):
      k = kh * 3 + kw
      tmp = tmp + rows[kh] * wdt[:, k:k + 1]        # (hidden,1) bcast over HW
    tmp = shift(tmp, kw - 1)
    if kw == 0:                                     # source col = x-1 invalid at x=0
      tmp = jnp.where(xx >= 1, tmp, 0.0)
    elif kw == 2:                                   # source col = x+1 invalid at x=W-1
      tmp = jnp.where(xx <= W - 2, tmp, 0.0)
    acc = acc + tmp
  acc = jnp.maximum(acc + bd_ref[...], 0.0)         # (hidden, HW)

  if stride == 2:
    # stride-2 output positions are a subset of the stride-1 ones (padding=1).
    acc = acc.reshape(hidden, H, W)[:, ::2, ::2].reshape(hidden, Ho * Wo)

  # ---- 1x1 projection (BN scale pre-folded), channels-first output -------
  y_cf = jnp.dot(wp_ref[...], acc, preferred_element_type=jnp.float32)
  y_cf = y_cf + bp_ref[...]                         # (oup, Ho*Wo), lane-dense

  if use_res:
    y_cf = y_cf + x_cf

  o_ref[0] = y_cf.astype(o_ref.dtype)


# ---------------------------------------------------------------------------
# Wrapper: NCHW in / NCHW out, like the PyTorch module.
# ---------------------------------------------------------------------------

def inverted_residual_forward(x_nchw, params, *, stride, expand_ratio, inp, oup):
  assert stride in (1, 2)
  N, C, H, W = x_nchw.shape
  assert C == inp
  hidden = int(round(inp * expand_ratio))
  has_expand = expand_ratio != 1
  use_res = (stride == 1) and (inp == oup)
  Ho = (H + 2 - 3) // stride + 1
  Wo = (W + 2 - 3) // stride + 1
  HW, HoWo = H * W, Ho * Wo

  # ---- fold BN scale into conv weights (one-time, host side) -------------
  wdt_eff = (params["w_dw"] * params["s2"][None, :]).T          # (hidden, 9)
  bd = params["b2"].reshape(hidden, 1)
  wp_eff = (params["w_proj"] * params["s3"][None, :]).T         # (oup, hidden)
  bp = params["b3"].reshape(oup, 1)

  x_cf = x_nchw.reshape(N, inp, HW)      # free view of NCHW (channels-first)

  kernel = functools.partial(
      _fused_inverted_residual_kernel,
      has_expand=has_expand, use_res=use_res, stride=stride,
      H=H, W=W, Ho=Ho, Wo=Wo, hidden=hidden)

  in_specs = [pl.BlockSpec((1, inp, HW), lambda n: (n, 0, 0))]
  args = [x_cf]
  if has_expand:
    wet_eff = (params["w_expand"] * params["s1"][None, :]).T    # (hidden, inp)
    be = params["b1"].reshape(hidden, 1)
    in_specs += [pl.BlockSpec((hidden, inp), lambda n: (0, 0)),
                 pl.BlockSpec((hidden, 1), lambda n: (0, 0))]
    args += [wet_eff, be]
  in_specs += [pl.BlockSpec((hidden, 9), lambda n: (0, 0)),
               pl.BlockSpec((hidden, 1), lambda n: (0, 0)),
               pl.BlockSpec((oup, hidden), lambda n: (0, 0)),
               pl.BlockSpec((oup, 1), lambda n: (0, 0))]
  args += [wdt_eff, bd, wp_eff, bp]

  out_cf = pl.pallas_call(
      kernel,
      out_shape=jax.ShapeDtypeStruct((N, oup, HoWo), x_nchw.dtype),
      grid=(N,),
      in_specs=in_specs,
      out_specs=pl.BlockSpec((1, oup, HoWo), lambda n: (n, 0, 0)),
      compiler_params=pltpu.CompilerParams(
          dimension_semantics=("parallel",),
          vmem_limit_bytes=32 * 1024 * 1024),
  )(*args)

  return out_cf.reshape(N, oup, Ho, Wo)   # free view: already NCHW order


# ---------------------------------------------------------------------------
# Deterministic parameter construction (synthetic, no checkpoint)
# ---------------------------------------------------------------------------

def make_params(key, inp, oup, expand_ratio):
  hidden = int(round(inp * expand_ratio))
  eps = 1e-5
  k_exp, k_dw, k_proj = jax.random.split(key, 3)

  def bn_fold(c, tag):
    idx = jnp.arange(c, dtype=jnp.float32)
    gamma = 1.0 + 0.1 * jnp.cos(idx + tag)
    beta = 0.05 * jnp.sin(idx + tag)
    mean = 0.01 * idx
    var = 1.0 + 0.02 * idx
    scale = gamma / jnp.sqrt(var + eps)
    bias = beta - mean * scale
    return scale, bias

  params = {}
  if expand_ratio != 1:
    # torch weight (hidden, inp, 1, 1) -> matmul weight (inp, hidden)
    params["w_expand"] = 0.1 * jax.random.normal(k_exp, (inp, hidden), jnp.float32)
    params["s1"], params["b1"] = bn_fold(hidden, 1.0)
  # torch depthwise weight (hidden, 1, 3, 3) -> (9, hidden)
  params["w_dw"] = 0.1 * jax.random.normal(k_dw, (9, hidden), jnp.float32)
  params["s2"], params["b2"] = bn_fold(hidden, 2.0)
  # torch weight (oup, hidden, 1, 1) -> (hidden, oup)
  params["w_proj"] = 0.1 * jax.random.normal(k_proj, (hidden, oup), jnp.float32)
  params["s3"], params["b3"] = bn_fold(oup, 3.0)
  return params


# ---------------------------------------------------------------------------
# Pure-JAX reference (independent of the kernel's weight folding / layout)
# ---------------------------------------------------------------------------

def reference_forward(x_nchw, params, *, stride, expand_ratio, inp, oup):
  x = jnp.transpose(x_nchw, (0, 2, 3, 1))
  use_res = (stride == 1) and (inp == oup)

  h = x
  if expand_ratio != 1:
    h = jnp.einsum("nhwc,cd->nhwd", h, params["w_expand"])
    h = jnp.maximum(h * params["s1"] + params["b1"], 0.0)

  N, H, W, C = h.shape
  hp = jnp.pad(h, ((0, 0), (1, 1), (1, 1), (0, 0)))
  Ho = (H + 2 - 3) // stride + 1
  Wo = (W + 2 - 3) // stride + 1
  acc = jnp.zeros((N, Ho, Wo, C), jnp.float32)
  for kh in range(3):
    for kw in range(3):
      patch = hp[:, kh:kh + (Ho - 1) * stride + 1:stride,
                 kw:kw + (Wo - 1) * stride + 1:stride, :]
      acc = acc + patch * params["w_dw"][kh * 3 + kw]
  h = jnp.maximum(acc * params["s2"] + params["b2"], 0.0)

  out = jnp.einsum("nhwc,cd->nhwd", h, params["w_proj"])
  out = out * params["s3"] + params["b3"]
  if use_res:
    out = out + x
  return jnp.transpose(out, (0, 3, 1, 2))


# ---------------------------------------------------------------------------
# Demo
# ---------------------------------------------------------------------------

if __name__ == "__main__":
  INP, OUP = 8, 8
  STRIDE = 1
  EXPAND = 2          # hidden_dim = 16; use_res_connect = True
  N, H, W = 2, 16, 16

  key = jax.random.PRNGKey(0)
  k_x, k_p = jax.random.split(key)
  x = jax.random.normal(k_x, (N, INP, H, W), jnp.float32)   # NCHW, like torch
  params = make_params(k_p, INP, OUP, EXPAND)

  out = inverted_residual_forward(
      x, params, stride=STRIDE, expand_ratio=EXPAND, inp=INP, oup=OUP)
  out = jax.block_until_ready(out)

  ref = jax.block_until_ready(reference_forward(
      x, params, stride=STRIDE, expand_ratio=EXPAND, inp=INP, oup=OUP))

  assert out.shape == (N, OUP, H, W), out.shape
  assert jnp.allclose(out, ref, rtol=1e-4, atol=1e-4), \
      float(jnp.max(jnp.abs(out - ref)))
  print("KERNEL_OK")
</pallas_src>

<mosaic_0001>
module attributes {stable_mosaic.version = 11 : i64} {
  func.func @_fused_inverted_residual_kernel(%arg0: i32, %arg1: memref<1x8x256xf32, #tpu.memory_space<vmem>>, %arg2: memref<16x8xf32, #tpu.memory_space<vmem>>, %arg3: memref<16x1xf32, #tpu.memory_space<vmem>>, %arg4: memref<16x9xf32, #tpu.memory_space<vmem>>, %arg5: memref<16x1xf32, #tpu.memory_space<vmem>>, %arg6: memref<8x16xf32, #tpu.memory_space<vmem>>, %arg7: memref<8x1xf32, #tpu.memory_space<vmem>>, %arg8: memref<1x8x256xf32, #tpu.memory_space<vmem>>) attributes {dimension_semantics = [#tpu.dimension_semantics<parallel>], iteration_bounds = array<i64: 2>, scalar_prefetch = 0 : i64, scratch_operands = 0 : i64, tpu.core_type = #tpu.core_type<tc>, window_params = [{transform_indices = @transform_0, window_bounds = array<i64: 1, 8, 256>}, {pipeline_mode = #tpu.pipeline_mode<synchronous>, transform_indices = @transform_1, window_bounds = array<i64: 16, 8>}, {pipeline_mode = #tpu.pipeline_mode<synchronous>, transform_indices = @transform_2, window_bounds = array<i64: 16, 1>}, {pipeline_mode = #tpu.pipeline_mode<synchronous>, transform_indices = @transform_3, window_bounds = array<i64: 16, 9>}, {pipeline_mode = #tpu.pipeline_mode<synchronous>, transform_indices = @transform_4, window_bounds = array<i64: 16, 1>}, {pipeline_mode = #tpu.pipeline_mode<synchronous>, transform_indices = @transform_5, window_bounds = array<i64: 8, 16>}, {pipeline_mode = #tpu.pipeline_mode<synchronous>, transform_indices = @transform_6, window_bounds = array<i64: 8, 1>}, {transform_indices = @transform_7, window_bounds = array<i64: 1, 8, 256>}]} {
    %c0 = arith.constant 0 : index
    %c0_0 = arith.constant 0 : index
    %c0_1 = arith.constant 0 : index
    %0 = vector.load %arg1[%c0, %c0_0, %c0_1] : memref<1x8x256xf32, #tpu.memory_space<vmem>>, vector<1x8x256xf32>
    %1 = vector.shape_cast %0 : vector<1x8x256xf32> to vector<8x256xf32>
    %c0_2 = arith.constant 0 : index
    %c0_3 = arith.constant 0 : index
    %2 = vector.load %arg2[%c0_2, %c0_3] : memref<16x8xf32, #tpu.memory_space<vmem>>, vector<16x8xf32>
    %cst = arith.constant dense<0.000000e+00> : vector<16x256xf32>
    %3 = tpu.matmul %2, %1, %cst {dimension_numbers = #tpu.dot_dimension_numbers<[1], [0], [0], [1], [0, 0, 1, 1], [], []>} : vector<16x8xf32>, vector<8x256xf32>, vector<16x256xf32> -> vector<16x256xf32>
    %c0_4 = arith.constant 0 : index
    %c0_5 = arith.constant 0 : index
    %4 = vector.load %arg3[%c0_4, %c0_5] : memref<16x1xf32, #tpu.memory_space<vmem>>, vector<16x1xf32>
    %5 = vector.broadcast %4 : vector<16x1xf32> to vector<16x256xf32>
    %6 = arith.addf %3, %5 : vector<16x256xf32>
    %cst_6 = arith.constant 0.000000e+00 : f32
    %7 = vector.broadcast %cst_6 : f32 to vector<16x256xf32>
    %8 = arith.maximumf %6, %7 : vector<16x256xf32>
    %c0_7 = arith.constant 0 : index
    %c0_8 = arith.constant 0 : index
    %9 = vector.load %arg4[%c0_7, %c0_8] : memref<16x9xf32, #tpu.memory_space<vmem>>, vector<16x9xf32>
    %cst_9 = arith.constant 0.000000e+00 : f32
    %10 = vector.broadcast %cst_9 : f32 to vector<16x16xf32>
    %11 = vector.extract_strided_slice %8 {offsets = [0, 0], sizes = [16, 240], strides = [1, 1]} : vector<16x256xf32> to vector<16x240xf32>
    %12 = tpu.concatenate %10, %11 in 1 : vector<16x16xf32>, vector<16x240xf32> -> vector<16x256xf32>
    %cst_10 = arith.constant 0.000000e+00 : f32
    %13 = vector.broadcast %cst_10 : f32 to vector<16x16xf32>
    %14 = vector.extract_strided_slice %8 {offsets = [0, 16], sizes = [16, 240], strides = [1, 1]} : vector<16x256xf32> to vector<16x240xf32>
    %15 = tpu.concatenate %14, %13 in 1 : vector<16x240xf32>, vector<16x16xf32> -> vector<16x256xf32>
    %16 = tpu.iota {dimensions = array<i32: 1>} : vector<1x256xi32>
    %c16_i32 = arith.constant 16 : i32
    %c0_i32 = arith.constant 0 : i32
    %17 = arith.cmpi eq, %c16_i32, %c0_i32 : i32
    %c1_i32 = arith.constant 1 : i32
    %18 = arith.select %17, %c1_i32, %c16_i32 : i32
    %19 = vector.broadcast %18 : i32 to vector<1x256xi32>
    %20 = arith.remsi %16, %19 : vector<1x256xi32>
    %c0_i32_11 = arith.constant 0 : i32
    %21 = vector.broadcast %c0_i32_11 : i32 to vector<1x256xi32>
    %22 = arith.cmpi ne, %20, %21 : vector<1x256xi32>
    %c0_i32_12 = arith.constant 0 : i32
    %23 = vector.broadcast %c0_i32_12 : i32 to vector<1x256xi32>
    %24 = arith.cmpi slt, %20, %23 : vector<1x256xi32>
    %c0_i32_13 = arith.constant 0 : i32
    %25 = arith.cmpi slt, %18, %c0_i32_13 : i32
    %26 = vector.broadcast %25 : i1 to vector<1x256xi1>
    %27 = vector.broadcast %26 : vector<1x256xi1> to vector<1x256xi1>
    %28 = arith.xori %24, %27 : vector<1x256xi1>
    %29 = arith.andi %28, %22 : vector<1x256xi1>
    %30 = vector.broadcast %18 : i32 to vector<1x256xi32>
    %31 = arith.addi %20, %30 : vector<1x256xi32>
    %32 = arith.select %29, %31, %20 : vector<1x256xi1>, vector<1x256xi32>
    %cst_14 = arith.constant 0.000000e+00 : f32
    %33 = vector.broadcast %cst_14 : f32 to vector<16x256xf32>
    %cst_15 = arith.constant 0.000000e+00 : f32
    %34 = vector.broadcast %cst_15 : f32 to vector<16x256xf32>
    %35 = vector.extract_strided_slice %9 {offsets = [0, 0], sizes = [16, 1], strides = [1, 1]} : vector<16x9xf32> to vector<16x1xf32>
    %36 = vector.broadcast %35 : vector<16x1xf32> to vector<16x256xf32>
    %37 = arith.mulf %12, %36 : vector<16x256xf32>
    %38 = arith.addf %34, %37 : vector<16x256xf32>
    %39 = vector.extract_strided_slice %9 {offsets = [0, 3], sizes = [16, 1], strides = [1, 1]} : vector<16x9xf32> to vector<16x1xf32>
    %40 = vector.broadcast %39 : vector<16x1xf32> to vector<16x256xf32>
    %41 = arith.mulf %8, %40 : vector<16x256xf32>
    %42 = arith.addf %38, %41 : vector<16x256xf32>
    %43 = vector.extract_strided_slice %9 {offsets = [0, 6], sizes = [16, 1], strides = [1, 1]} : vector<16x9xf32> to vector<16x1xf32>
    %44 = vector.broadcast %43 : vector<16x1xf32> to vector<16x256xf32>
    %45 = arith.mulf %15, %44 : vector<16x256xf32>
    %46 = arith.addf %42, %45 : vector<16x256xf32>
    %cst_16 = arith.constant 0.000000e+00 : f32
    %47 = vector.broadcast %cst_16 : f32 to vector<16x1xf32>
    %48 = vector.extract_strided_slice %46 {offsets = [0, 0], sizes = [16, 255], strides = [1, 1]} : vector<16x256xf32> to vector<16x255xf32>
    %49 = tpu.concatenate %47, %48 in 1 : vector<16x1xf32>, vector<16x255xf32> -> vector<16x256xf32>
    %c1_i32_17 = arith.constant 1 : i32
    %50 = vector.broadcast %c1_i32_17 : i32 to vector<1x256xi32>
    %51 = arith.cmpi sge, %32, %50 : vector<1x256xi32>
    %cst_18 = arith.constant 0.000000e+00 : f32
    %52 = vector.shape_cast %51 : vector<1x256xi1> to vector<1x256xi1>
    %53 = vector.broadcast %52 : vector<1x256xi1> to vector<16x256xi1>
    %54 = vector.broadcast %cst_18 : f32 to vector<16x256xf32>
    %55 = arith.select %53, %49, %54 : vector<16x256xi1>, vector<16x256xf32>
    %56 = arith.addf %33, %55 : vector<16x256xf32>
    %cst_19 = arith.constant 0.000000e+00 : f32
    %57 = vector.broadcast %cst_19 : f32 to vector<16x256xf32>
    %58 = vector.extract_strided_slice %9 {offsets = [0, 1], sizes = [16, 1], strides = [1, 1]} : vector<16x9xf32> to vector<16x1xf32>
    %59 = vector.broadcast %58 : vector<16x1xf32> to vector<16x256xf32>
    %60 = arith.mulf %12, %59 : vector<16x256xf32>
    %61 = arith.addf %57, %60 : vector<16x256xf32>
    %62 = vector.extract_strided_slice %9 {offsets = [0, 4], sizes = [16, 1], strides = [1, 1]} : vector<16x9xf32> to vector<16x1xf32>
    %63 = vector.broadcast %62 : vector<16x1xf32> to vector<16x256xf32>
    %64 = arith.mulf %8, %63 : vector<16x256xf32>
    %65 = arith.addf %61, %64 : vector<16x256xf32>
    %66 = vector.extract_strided_slice %9 {offsets = [0, 7], sizes = [16, 1], strides = [1, 1]} : vector<16x9xf32> to vector<16x1xf32>
    %67 = vector.broadcast %66 : vector<16x1xf32> to vector<16x256xf32>
    %68 = arith.mulf %15, %67 : vector<16x256xf32>
    %69 = arith.addf %65, %68 : vector<16x256xf32>
    %70 = arith.addf %56, %69 : vector<16x256xf32>
    %cst_20 = arith.constant 0.000000e+00 : f32
    %71 = vector.broadcast %cst_20 : f32 to vector<16x256xf32>
    %72 = vector.extract_strided_slice %9 {offsets = [0, 2], sizes = [16, 1], strides = [1, 1]} : vector<16x9xf32> to vector<16x1xf32>
    %73 = vector.broadcast %72 : vector<16x1xf32> to vector<16x256xf32>
    %74 = arith.mulf %12, %73 : vector<16x256xf32>
    %75 = arith.addf %71, %74 : vector<16x256xf32>
    %76 = vector.extract_strided_slice %9 {offsets = [0, 5], sizes = [16, 1], strides = [1, 1]} : vector<16x9xf32> to vector<16x1xf32>
    %77 = vector.broadcast %76 : vector<16x1xf32> to vector<16x256xf32>
    %78 = arith.mulf %8, %77 : vector<16x256xf32>
    %79 = arith.addf %75, %78 : vector<16x256xf32>
    %80 = vector.extract_strided_slice %9 {offsets = [0, 8], sizes = [16, 1], strides = [1, 1]} : vector<16x9xf32> to vector<16x1xf32>
    %81 = vector.broadcast %80 : vector<16x1xf32> to vector<16x256xf32>
    %82 = arith.mulf %15, %81 : vector<16x256xf32>
    %83 = arith.addf %79, %82 : vector<16x256xf32>
    %cst_21 = arith.constant 0.000000e+00 : f32
    %84 = vector.broadcast %cst_21 : f32 to vector<16x1xf32>
    %85 = vector.extract_strided_slice %83 {offsets = [0, 1], sizes = [16, 255], strides = [1, 1]} : vector<16x256xf32> to vector<16x255xf32>
    %86 = tpu.concatenate %85, %84 in 1 : vector<16x255xf32>, vector<16x1xf32> -> vector<16x256xf32>
    %c14_i32 = arith.constant 14 : i32
    %87 = vector.broadcast %c14_i32 : i32 to vector<1x256xi32>
    %88 = arith.cmpi sle, %32, %87 : vector<1x256xi32>
    %cst_22 = arith.constant 0.000000e+00 : f32
    %89 = vector.shape_cast %88 : vector<1x256xi1> to vector<1x256xi1>
    %90 = vector.broadcast %89 : vector<1x256xi1> to vector<16x256xi1>
    %91 = vector.broadcast %cst_22 : f32 to vector<16x256xf32>
    %92 = arith.select %90, %86, %91 : vector<16x256xi1>, vector<16x256xf32>
    %93 = arith.addf %70, %92 : vector<16x256xf32>
    %c0_23 = arith.constant 0 : index
    %c0_24 = arith.constant 0 : index
    %94 = vector.load %arg5[%c0_23, %c0_24] : memref<16x1xf32, #tpu.memory_space<vmem>>, vector<16x1xf32>
    %95 = vector.broadcast %94 : vector<16x1xf32> to vector<16x256xf32>
    %96 = arith.addf %93, %95 : vector<16x256xf32>
    %cst_25 = arith.constant 0.000000e+00 : f32
    %97 = vector.broadcast %cst_25 : f32 to vector<16x256xf32>
    %98 = arith.maximumf %96, %97 : vector<16x256xf32>
    %c0_26 = arith.constant 0 : index
    %c0_27 = arith.constant 0 : index
    %99 = vector.load %arg6[%c0_26, %c0_27] : memref<8x16xf32, #tpu.memory_space<vmem>>, vector<8x16xf32>
    %cst_28 = arith.constant dense<0.000000e+00> : vector<8x256xf32>
    %100 = tpu.matmul %99, %98, %cst_28 {dimension_numbers = #tpu.dot_dimension_numbers<[1], [0], [0], [1], [0, 0, 1, 1], [], []>} : vector<8x16xf32>, vector<16x256xf32>, vector<8x256xf32> -> vector<8x256xf32>
    %c0_29 = arith.constant 0 : index
    %c0_30 = arith.constant 0 : index
    %101 = vector.load %arg7[%c0_29, %c0_30] : memref<8x1xf32, #tpu.memory_space<vmem>>, vector<8x1xf32>
    %102 = vector.broadcast %101 : vector<8x1xf32> to vector<8x256xf32>
    %103 = arith.addf %100, %102 : vector<8x256xf32>
    %104 = arith.addf %103, %1 : vector<8x256xf32>
    %c0_31 = arith.constant 0 : index
    %c0_32 = arith.constant 0 : index
    %c0_33 = arith.constant 0 : index
    %105 = vector.load %arg8[%c0_31, %c0_32, %c0_33] : memref<1x8x256xf32, #tpu.memory_space<vmem>>, vector<1x8x256xf32>
    %106 = vector.shape_cast %105 : vector<1x8x256xf32> to vector<8x256xf32>
    %107 = vector.shape_cast %104 : vector<8x256xf32> to vector<1x8x256xf32>
    tpu.vector_store %arg8[%c0_31, %c0_32, %c0_33], %107 {strides = array<i32>} : memref<1x8x256xf32, #tpu.memory_space<vmem>>, vector<1x8x256xf32>,
    return
  }
  func.func @transform_0(%arg0: i32) -> (i32, i32, i32) {
    %c0_i32 = arith.constant 0 : i32
    %c0_i32_0 = arith.constant 0 : i32
    %c0_i32_1 = arith.constant 0 : i32
    return %arg0, %c0_i32, %c0_i32_0 : i32, i32, i32
  }
  func.func @transform_1(%arg0: i32) -> (i32, i32) {
    %c0_i32 = arith.constant 0 : i32
    %c0_i32_0 = arith.constant 0 : i32
    %c0_i32_1 = arith.constant 0 : i32
    return %c0_i32, %c0_i32_0 : i32, i32
  }
  func.func @transform_2(%arg0: i32) -> (i32, i32) {
    %c0_i32 = arith.constant 0 : i32
    %c0_i32_0 = arith.constant 0 : i32
    %c0_i32_1 = arith.constant 0 : i32
    return %c0_i32, %c0_i32_0 : i32, i32
  }
  func.func @transform_3(%arg0: i32) -> (i32, i32) {
    %c0_i32 = arith.constant 0 : i32
    %c0_i32_0 = arith.constant 0 : i32
    %c0_i32_1 = arith.constant 0 : i32
    return %c0_i32, %c0_i32_0 : i32, i32
  }
  func.func @transform_4(%arg0: i32) -> (i32, i32) {
    %c0_i32 = arith.constant 0 : i32
    %c0_i32_0 = arith.constant 0 : i32
    %c0_i32_1 = arith.constant 0 : i32
    return %c0_i32, %c0_i32_0 : i32, i32
  }
  func.func @transform_5(%arg0: i32) -> (i32, i32) {
    %c0_i32 = arith.constant 0 : i32
    %c0_i32_0 = arith.constant 0 : i32
    %c0_i32_1 = arith.constant 0 : i32
    return %c0_i32, %c0_i32_0 : i32, i32
  }
  func.func @transform_6(%arg0: i32) -> (i32, i32) {
    %c0_i32 = arith.constant 0 : i32
    %c0_i32_0 = arith.constant 0 : i32
    %c0_i32_1 = arith.constant 0 : i32
    return %c0_i32, %c0_i32_0 : i32, i32
  }
  func.func @transform_7(%arg0: i32) -> (i32, i32, i32) {
    %c0_i32 = arith.constant 0 : i32
    %c0_i32_0 = arith.constant 0 : i32
    %c0_i32_1 = arith.constant 0 : i32
    return %arg0, %c0_i32, %c0_i32_0 : i32, i32, i32
  }
}

</mosaic_0001>

<llo_original>
// kernel: tpu_custom_call.1
$region0: #{tpu_custom_call.1}
  #allocation0 [shape = 'u32[]', space=smem, size = 0x4, offset = 0x4, fixed_abs, tag = 'smem constant byte address 0x4 - core index']
  #allocation1 [shape = 'u32[144,128]{1,0:T(1,128)}', space=vmem, size = 0x12000, scoped, tag = 'internal scratch']
  %s0 = inlined_call_operand.vmem [shape: f32[2,8,256], index: 0, kind: input, shape index: {}]
  %s1 = inlined_call_operand.vmem [shape: f32[16,8], index: 1, kind: input, shape index: {}]
  %s2 = inlined_call_operand.vmem [shape: f32[16,1], index: 2, kind: input, shape index: {}]
  %s3 = inlined_call_operand.vmem [shape: f32[16,9], index: 3, kind: input, shape index: {}]
  %s4 = inlined_call_operand.vmem [shape: f32[16,1], index: 4, kind: input, shape index: {}]
  %s5 = inlined_call_operand.vmem [shape: f32[8,16], index: 5, kind: input, shape index: {}]
  %s6 = inlined_call_operand.vmem [shape: f32[8,1], index: 6, kind: input, shape index: {}]
  %s7 = inlined_call_operand.hbm [shape: f32[2,8,256], index: 7, kind: output, shape index: {}]
  %s8 = sld [smem:[#allocation0]]
  $region61: #{tpu_custom_call.1} parent=0
    _
  %s10 = ssub.s32 1, %s8
  %s11 = scalar_select 0, %s10, %s8
  $region1: #{tpu_custom_call.1} parent=0
    #allocation2 [shape = 'u8[16384]{0}', space=vmem, size = 0x4000, scoped, tag = 'output window, operand 0']
    #allocation3 [shape = 's32[2]{0}', space=sflag, size = 0x8, scoped, tag = 'scoped memory for tpu_custom_call.1']
    %12 = vsyncpa [#allocation3], 0
    %s13 = scalar_lea.sflag [#allocation3], 1
    %14 = vsyncpa %s13, 0
    loop: start=0, step=1, limit=4
    $region2: #{tpu_custom_call.1} parent=1 // loop_pre_header
      _
    $region3: #{tpu_custom_call.1} parent=1 // loop_header
      %s16 = sphi 0, %s20
      %p17 = scmp.ge.s32.totalorder %s16, 4
      %s26 = sphi 0, %s28
      %s29 = sphi 0, %s26
      %s30 = sphi 0, %s29
      %s46 = sphi 0, %s30
      %s50 = sphi 0, %s50
      %s52 = sphi 0, %s50
      %s53 = sphi 0, %s52
      %s67 = sphi 0, %s53
      %s71 = sphi 0, %s71
      %s73 = sphi 0, %s71
      %s74 = sphi 0, %s73
      %s88 = sphi 0, %s74
      %s92 = sphi 0, %s92
      %s94 = sphi 0, %s92
      %s95 = sphi 0, %s94
      %s109 = sphi 0, %s95
      %s113 = sphi 0, %s113
      %s115 = sphi 0, %s113
      %s116 = sphi 0, %s115
      %s130 = sphi 0, %s116
      %s134 = sphi 0, %s134
      %s136 = sphi 0, %s134
      %s137 = sphi 0, %s136
      %s151 = sphi 0, %s137
      %s155 = sphi 0, %s155
      %s157 = sphi 0, %s155
      %s158 = sphi 0, %s157
      %s172 = sphi 0, %s158
      %s178 = sphi 0, %s180
      %s181 = sphi 0, %s178
      %s182 = sphi 0, %s181
      %s198 = sphi 0, %s182
    $region4: #{tpu_custom_call.1} parent=1 // loop_header_branch
      %19 = sbr.rel (%p17) target = $region8
    $region5: #{tpu_custom_call.1} parent=1 // loop_body
      %s21 = ssub.s32 %s16, 1
      %s22 = ssub.s32 %s16, 2
      %s23 = sadd.s32 %s16, 1
      %s24 = ssub.s32 %s16, %s23
      %p25 = scmp.eq.s32.totalorder %s24, 0
      %s27 = sadd.s32 %s26, 1
      %s28 = scalar_select %p25, %s26, %s27
      %p31 = pneg %p25
      %p32 = scmp.eq.s32.totalorder %s16, 1
      %p33 = por %p31, %p32
      %p34 = scmp.ne.s32.totalorder %s26, %s29
      %p35 = scmp.eq.s32.totalorder %s16, 0
      %p36 = por %p34, %p35
      %p37 = scmp.ne.s32.totalorder %s26, %s29
      %p38 = scmp.eq.s32.totalorder %s21, 1
      %p39 = por %p37, %p38
      %p40 = scmp.ne.s32.totalorder %s29, %s30
      %p41 = scmp.eq.s32.totalorder %s21, 0
      %p42 = por %p40, %p41
      %p43 = scmp.ne.s32.totalorder %s29, %s30
      %p44 = scmp.eq.s32.totalorder %s22, 1
      %p45 = por %p43, %p44
      %p47 = scmp.ne.s32.totalorder %s30, %s46
      %p48 = scmp.eq.s32.totalorder %s22, 0
      %p49 = por %p47, %p48
      %s51 = sadd.s32 %s50, 1
      %p54 = scmp.eq.s32.totalorder %s16, 1
      %p55 = scmp.ne.s32.totalorder %s50, %s52
      %p56 = scmp.eq.s32.totalorder %s16, 0
      %p57 = por %p55, %p56
      %p58 = scmp.ne.s32.totalorder %s50, %s52
      %p59 = scmp.eq.s32.totalorder %s21, 1
      %p60 = por %p58, %p59
      %p61 = scmp.ne.s32.totalorder %s52, %s53
      %p62 = scmp.eq.s32.totalorder %s21, 0
      %p63 = por %p61, %p62
      %p64 = scmp.ne.s32.totalorder %s52, %s53
      %p65 = scmp.eq.s32.totalorder %s22, 1
      %p66 = por %p64, %p65
      %p68 = scmp.ne.s32.totalorder %s53, %s67
      %p69 = scmp.eq.s32.totalorder %s22, 0
      %p70 = por %p68, %p69
      %s72 = sadd.s32 %s71, 1
      %p75 = scmp.eq.s32.totalorder %s16, 1
      %p76 = scmp.ne.s32.totalorder %s71, %s73
      %p77 = scmp.eq.s32.totalorder %s16, 0
      %p78 = por %p76, %p77
      %p79 = scmp.ne.s32.totalorder %s71, %s73
      %p80 = scmp.eq.s32.totalorder %s21, 1
      %p81 = por %p79, %p80
      %p82 = scmp.ne.s32.totalorder %s73, %s74
      %p83 = scmp.eq.s32.totalorder %s21, 0
      %p84 = por %p82, %p83
      %p85 = scmp.ne.s32.totalorder %s73, %s74
      %p86 = scmp.eq.s32.totalorder %s22, 1
      %p87 = por %p85, %p86
      %p89 = scmp.ne.s32.totalorder %s74, %s88
      %p90 = scmp.eq.s32.totalorder %s22, 0
      %p91 = por %p89, %p90
      %s93 = sadd.s32 %s92, 1
      %p96 = scmp.eq.s32.totalorder %s16, 1
      %p97 = scmp.ne.s32.totalorder %s92, %s94
      %p98 = scmp.eq.s32.totalorder %s16, 0
      %p99 = por %p97, %p98
      %p100 = scmp.ne.s32.totalorder %s92, %s94
      %p101 = scmp.eq.s32.totalorder %s21, 1
      %p102 = por %p100, %p101
      %p103 = scmp.ne.s32.totalorder %s94, %s95
      %p104 = scmp.eq.s32.totalorder %s21, 0
      %p105 = por %p103, %p104
      %p106 = scmp.ne.s32.totalorder %s94, %s95
      %p107 = scmp.eq.s32.totalorder %s22, 1
      %p108 = por %p106, %p107
      %p110 = scmp.ne.s32.totalorder %s95, %s109
      %p111 = scmp.eq.s32.totalorder %s22, 0
      %p112 = por %p110, %p111
      %s114 = sadd.s32 %s113, 1
      %p117 = scmp.eq.s32.totalorder %s16, 1
      %p118 = scmp.ne.s32.totalorder %s113, %s115
      %p119 = scmp.eq.s32.totalorder %s16, 0
      %p120 = por %p118, %p119
      %p121 = scmp.ne.s32.totalorder %s113, %s115
      %p122 = scmp.eq.s32.totalorder %s21, 1
      %p123 = por %p121, %p122
      %p124 = scmp.ne.s32.totalorder %s115, %s116
      %p125 = scmp.eq.s32.totalorder %s21, 0
      %p126 = por %p124, %p125
      %p127 = scmp.ne.s32.totalorder %s115, %s116
      %p128 = scmp.eq.s32.totalorder %s22, 1
      %p129 = por %p127, %p128
      %p131 = scmp.ne.s32.totalorder %s116, %s130
      %p132 = scmp.eq.s32.totalorder %s22, 0
      %p133 = por %p131, %p132
      %s135 = sadd.s32 %s134, 1
      %p138 = scmp.eq.s32.totalorder %s16, 1
      %p139 = scmp.ne.s32.totalorder %s134, %s136
      %p140 = scmp.eq.s32.totalorder %s16, 0
      %p141 = por %p139, %p140
      %p142 = scmp.ne.s32.totalorder %s134, %s136
      %p143 = scmp.eq.s32.totalorder %s21, 1
      %p144 = por %p142, %p143
      %p145 = scmp.ne.s32.totalorder %s136, %s137
      %p146 = scmp.eq.s32.totalorder %s21, 0
      %p147 = por %p145, %p146
      %p148 = scmp.ne.s32.totalorder %s136, %s137
      %p149 = scmp.eq.s32.totalorder %s22, 1
      %p150 = por %p148, %p149
      %p152 = scmp.ne.s32.totalorder %s137, %s151
      %p153 = scmp.eq.s32.totalorder %s22, 0
      %p154 = por %p152, %p153
      %s156 = sadd.s32 %s155, 1
      %p159 = scmp.eq.s32.totalorder %s16, 1
      %p160 = scmp.ne.s32.totalorder %s155, %s157
      %p161 = scmp.eq.s32.totalorder %s16, 0
      %p162 = por %p160, %p161
      %p163 = scmp.ne.s32.totalorder %s155, %s157
      %p164 = scmp.eq.s32.totalorder %s21, 1
      %p165 = por %p163, %p164
      %p166 = scmp.ne.s32.totalorder %s157, %s158
      %p167 = scmp.eq.s32.totalorder %s21, 0
      %p168 = por %p166, %p167
      %p169 = scmp.ne.s32.totalorder %s157, %s158
      %p170 = scmp.eq.s32.totalorder %s22, 1
      %p171 = por %p169, %p170
      %p173 = scmp.ne.s32.totalorder %s158, %s172
      %p174 = scmp.eq.s32.totalorder %s22, 0
      %p175 = por %p173, %p174
      %s176 = ssub.s32 %s16, %s23
      %p177 = scmp.eq.s32.totalorder %s176, 0
      %s179 = sadd.s32 %s178, 1
      %s180 = scalar_select %p177, %s178, %s179
      %p183 = pneg %p177
      %p184 = scmp.eq.s32.totalorder %s16, 1
      %p185 = por %p183, %p184
      %p186 = scmp.ne.s32.totalorder %s178, %s181
      %p187 = scmp.eq.s32.totalorder %s16, 0
      %p188 = por %p186, %p187
      %p189 = scmp.ne.s32.totalorder %s178, %s181
      %p190 = scmp.eq.s32.totalorder %s21, 1
      %p191 = por %p189, %p190
      %p192 = scmp.ne.s32.totalorder %s181, %s182
      %p193 = scmp.eq.s32.totalorder %s21, 0
      %p194 = por %p192, %p193
      %p195 = scmp.ne.s32.totalorder %s181, %s182
      %p196 = scmp.eq.s32.totalorder %s22, 1
      %p197 = por %p195, %p196
      %p199 = scmp.ne.s32.totalorder %s182, %s198
      %p200 = scmp.eq.s32.totalorder %s22, 0
      %p201 = por %p199, %p200
      %p202 = scmp.le.s32.totalorder 1, %s16
      %p203 = scmp.lt.s32.totalorder %s16, 3
      %p204 = pnand %p202, %p203
      %p205 = pneg %p204
      // Predicated region
      $region9: #{tpu_custom_call.1} parent=5 // pred_check
        _
      $region10: #{tpu_custom_call.1} parent=5 // pred_check_branch
        %207 = sbr.rel (%p204) target = $region12
      $region11: #{tpu_custom_call.1} parent=5 // pred_region
        %s208 = ssub.s32 %s16, 1
        // Predicated region
        $region13: #{tpu_custom_call.1} parent=11 // pred_check
          %p209 = pneg %p63
        $region14: #{tpu_custom_call.1} parent=11 // pred_check_branch
          %211 = sbr.rel (%p209) target = $region16
        $region15: #{tpu_custom_call.1} parent=11 // pred_region
          _
        $region16: #{tpu_custom_call.1} parent=11 // pred_fallthru
          _
        // Predicated region
        $region17: #{tpu_custom_call.1} parent=11 // pred_check
          %p212 = pneg %p84
        $region18: #{tpu_custom_call.1} parent=11 // pred_check_branch
          %214 = sbr.rel (%p212) target = $region20
        $region19: #{tpu_custom_call.1} parent=11 // pred_region
          _
        $region20: #{tpu_custom_call.1} parent=11 // pred_fallthru
          _
        // Predicated region
        $region21: #{tpu_custom_call.1} parent=11 // pred_check
          %p215 = pneg %p105
        $region22: #{tpu_custom_call.1} parent=11 // pred_check_branch
          %217 = sbr.rel (%p215) target = $region24
        $region23: #{tpu_custom_call.1} parent=11 // pred_region
          _
        $region24: #{tpu_custom_call.1} parent=11 // pred_fallthru
          _
        // Predicated region
        $region25: #{tpu_custom_call.1} parent=11 // pred_check
          %p218 = pneg %p126
        $region26: #{tpu_custom_call.1} parent=11 // pred_check_branch
          %220 = sbr.rel (%p218) target = $region28
        $region27: #{tpu_custom_call.1} parent=11 // pred_region
          _
        $region28: #{tpu_custom_call.1} parent=11 // pred_fallthru
          _
        // Predicated region
        $region29: #{tpu_custom_call.1} parent=11 // pred_check
          %p221 = pneg %p147
        $region30: #{tpu_custom_call.1} parent=11 // pred_check_branch
          %223 = sbr.rel (%p221) target = $region32
        $region31: #{tpu_custom_call.1} parent=11 // pred_region
          _
        $region32: #{tpu_custom_call.1} parent=11 // pred_fallthru
          _
        // Predicated region
        $region33: #{tpu_custom_call.1} parent=11 // pred_check
          %p224 = pneg %p168
        $region34: #{tpu_custom_call.1} parent=11 // pred_check_branch
          %226 = sbr.rel (%p224) target = $region36
        $region35: #{tpu_custom_call.1} parent=11 // pred_region
          _
        $region36: #{tpu_custom_call.1} parent=11 // pred_fallthru
          _
      $region12: #{tpu_custom_call.1} parent=5 // pred_fallthru
        _
      %p227 = scmp.lt.s32.totalorder %s16, 2
      // Predicated region
      $region37: #{tpu_custom_call.1} parent=5 // pred_check
        %p228 = pneg %p227
      $region38: #{tpu_custom_call.1} parent=5 // pred_check_branch
        %230 = sbr.rel (%p228) target = $region40
      $region39: #{tpu_custom_call.1} parent=5 // pred_region
        // Predicated region
        $region41: #{tpu_custom_call.1} parent=39 // pred_check
          %p231 = pneg %p36
        $region42: #{tpu_custom_call.1} parent=39 // pred_check_branch
          %233 = sbr.rel (%p231) target = $region44
        $region43: #{tpu_custom_call.1} parent=39 // pred_region
          %p234 = scmp.lt.s32.totalorder %s16, 1
          %s235 = scalar_select %p234, %s16, 1
          %s236 = smul.addr %s235, 2
          %s237 = smul.addr %s236, 8
          %s238 = scalar_lea.vmem %s0, %s237
        $region44: #{tpu_custom_call.1} parent=39 // pred_fallthru
          _
      $region40: #{tpu_custom_call.1} parent=5 // pred_fallthru
        _
      %p239 = scmp.le.s32.totalorder 1, %s16
      %p240 = scmp.lt.s32.totalorder %s16, 3
      %p241 = pnand %p239, %p240
      %p242 = pneg %p241
      // Predicated region
      $region45: #{tpu_custom_call.1} parent=5 // pred_check
        _
      $region46: #{tpu_custom_call.1} parent=5 // pred_check_branch
        %244 = sbr.rel (%p241) target = $region48
      $region47: #{tpu_custom_call.1} parent=5 // pred_region
        %s245 = ssub.s32 %s16, 1
        %p246 = scmp.lt.s32.totalorder %s21, 1
        %s247 = scalar_select %p246, %s21, 1
        %s248 = smul.addr %s247, 2
        %s249 = smul.addr %s248, 8
        %s250 = scalar_lea.vmem %s0, %s249
        %p251 = pneg %p42
        %p252 = pneg %p39
        %p253 = pneg %p63
        %p254 = pneg %p60
        %p255 = pneg %p84
        %p256 = pneg %p81
        %p257 = pneg %p105
        %p258 = pneg %p102
        %p259 = pneg %p126
        %p260 = pneg %p123
        %p261 = pneg %p147
        %p262 = pneg %p144
        %p263 = pneg %p168
        %p264 = pneg %p165
        %p265 = pneg %p194
        %p266 = pneg %p191
        %s267 = sand.u32 %s181, 1
        %s268 = scalar_lea.sflag [#allocation3], %s267
        %s269 = sand.u32 %s181, 1
        %s270 = smul.addr %s269, 16
        %s271 = scalar_lea.vmem [#allocation2], %s270
        %p272 = scmp.lt.s32.totalorder %s21, 1
        %s273 = scalar_select %p272, %s21, 1
        %s274 = smul.addr %s273, 2
        %s275 = smul.addr %s274, 8
        %s276 = scalar_lea.vmem %s0, %s275
        %v277 = vld [vmem:[%s276] sm:$0xff]
        %v278 = vld [vmem:[%s276 + $0x8] sm:$0xff]
        %v279 = vld [vmem:[%s1] sm:$0xff]
        %v280 = vld [vmem:[%s1 + $0x8] sm:$0xff]
        %v281 = vld [vmem:[%s2] sm:$0xff]
        %v282 = vld [vmem:[%s2 + $0x8] sm:$0xff]
        %284 = vset.pattern.permute.xlu0 0
        %285 = vperm.xlu0 %284, %v281
        %v286 = vpop.permute.xlu0 %285
        %289 = vset.pattern.permute.xlu0 0
        %290 = vperm.xlu0 %289, %v282
        %v291 = vpop.permute.xlu0 %290
        %vm293 = vcmask 64512
        %v295 = vsel %vm293, %v279, 0
        %v298 = vsel %vm293, %v280, 0
        %300 = vmatprep.subr.mxu0 0.0
        %301 = vmatpush1.msra.mxu0 0.0
        %302 = vmatprep.subr.mxu0 0.0
        %303 = vmatpush1.msra.mxu0 0.0
        %304 = vmatprep.subr.mxu0 0.0
        %305 = vmatpush1.msra.mxu0 0.0
        %306 = vmatprep.subr.mxu0 0.0
        %307 = vmatpush1.msra.mxu0 0.0
        %308 = vmatprep.subr.mxu0 0.0
        %309 = vmatpush1.msra.mxu0 0.0
        %310 = vmatprep.subr.mxu0 0.0
        %311 = vmatpush1.msra.mxu0 0.0
        %312 = vmatprep.subr.mxu0 0.0
        %313 = vmatpush1.msra.mxu0 0.0
        %314 = vmatprep.subr.mxu0 0.0
        %315 = vmatpush1.msra.mxu0 0.0
        %316 = vmatprep.subr.mxu0 0.0
        %317 = vmatpush1.msra.mxu0 0.0
        %318 = vmatprep.subr.mxu0 0.0
        %319 = vmatpush1.msra.mxu0 0.0
        %320 = vmatprep.subr.mxu0 0.0
        %321 = vmatpush1.msra.mxu0 0.0
        %322 = vmatprep.subr.mxu0 0.0
        %323 = vmatpush1.msra.mxu0 0.0
        %324 = vmatprep.subr.mxu0 0.0
        %325 = vmatpush1.msra.mxu0 0.0
        %326 = vmatprep.subr.mxu0 0.0
        %327 = vmatpush1.msra.mxu0 0.0
        %328 = vmatprep.subr.mxu0 0.0
        %329 = vmatpush1.msra.mxu0 0.0
        %330 = vmatprep.subr.mxu0 %v278
        %331 = vmatpush1.msra.mxu0 %v277
        %332 = vmatprep.subr.mxu0 0.0
        %333 = vmatpush2.msra.mxu0 0.0
        %334 = vmatprep.subr.mxu0 0.0
        %335 = vmatpush2.msra.mxu0 0.0
        %336 = vmatprep.subr.mxu0 0.0
        %337 = vmatpush2.msra.mxu0 0.0
        %338 = vmatprep.subr.mxu0 0.0
        %339 = vmatpush2.msra.mxu0 0.0
        %340 = vmatprep.subr.mxu0 0.0
        %341 = vmatpush2.msra.mxu0 0.0
        %342 = vmatprep.subr.mxu0 0.0
        %343 = vmatpush2.msra.mxu0 0.0
        %344 = vmatprep.subr.mxu0 0.0
        %345 = vmatpush2.msra.mxu0 0.0
        %346 = vmatprep.subr.mxu0 0.0
        %347 = vmatpush2.msra.mxu0 0.0
        %348 = vmatprep.subr.mxu0 0.0
        %349 = vmatpush2.msra.mxu0 0.0
        %350 = vmatprep.subr.mxu0 0.0
        %351 = vmatpush2.msra.mxu0 0.0
        %352 = vmatprep.subr.mxu0 0.0
        %353 = vmatpush2.msra.mxu0 0.0
        %354 = vmatprep.subr.mxu0 0.0
        %355 = vmatpush2.msra.mxu0 0.0
        %356 = vmatprep.subr.mxu0 0.0
        %357 = vmatpush2.msra.mxu0 0.0
        %358 = vmatprep.subr.mxu0 0.0
        %359 = vmatpush2.msra.mxu0 0.0
        %360 = vmatprep.subr.mxu0 0.0
        %361 = vmatpush2.msra.mxu0 0.0
        %362 = vmatprep.subr.mxu0 0.0
        %363 = vmatpush2.msra.mxu0 0.0
        %364 = vmatprep.mubr.f32.mxu0 0.0
        %365 = vmatmul.mubr.f32.gmra.mxu0 %v295
        %v366 = vpop.f32.mrf.mxu0
        %v367 = vadd.f32 %v286, %v366
        %v368 = vpop.f32.mrf.mxu0
        %v369 = vadd.f32 %v286, %v368
        %370 = vmatprep.mubr.f32.mxu0 0.0
        %371 = vmatmul.mubr.f32.gmra.mxu0 %v298
        %v372 = vpop.f32.mrf.mxu0
        %v373 = vadd.f32 %v291, %v372
        %v374 = vpop.f32.mrf.mxu0
        %v375 = vadd.f32 %v291, %v374
        %376 = vdwg.mxu0
        %v377 = vmax.f32 %v367, 0.0
        %v378 = vmax.f32 %v369, 0.0
        %v379 = vmax.f32 %v373, 0.0
        %v380 = vmax.f32 %v375, 0.0
        %v381 = vld [vmem:[%s3] sm:$0xff]
        %v382 = vld [vmem:[%s3 + $0x8] sm:$0xff]
        %387 = vrot.lane.b32.xlu0 %v377, 16
        %v388 = vpop.permute.xlu0 %387
        %389 = vrot.lane.b32.xlu0 %v378, 16
        %v390 = vpop.permute.xlu0 %389
        %391 = vrot.lane.b32.xlu0 %v379, 16
        %v392 = vpop.permute.xlu0 %391
        %393 = vrot.lane.b32.xlu0 %v380, 16
        %v394 = vpop.permute.xlu0 %393
        %vm395 = vcmask 130048
        %v396 = vsel %vm395, %v388, %v390
        %v397 = vsel %vm395, %v392, %v394
        %v402 = vsel %vm395, 0.0, %v388
        %v403 = vsel %vm395, 0.0, %v392
        %404 = vrot.lane.b32.xlu0 %v377, 112
        %v405 = vpop.permute.xlu0 %404
        %406 = vrot.lane.b32.xlu0 %v378, 112
        %v407 = vpop.permute.xlu0 %406
        %408 = vrot.lane.b32.xlu0 %v379, 112
        %v409 = vpop.permute.xlu0 %408
        %410 = vrot.lane.b32.xlu0 %v380, 112
        %v411 = vpop.permute.xlu0 %410
        %vm412 = vcmask 916480
        %v413 = vsel %vm412, %v405, %v407
        %v414 = vsel %vm412, %v409, %v411
        %v419 = vsel %vm412, %v407, 0.0
        %v420 = vsel %vm412, %v411, 0.0
        %v421 = vlaneseq
        %v422 = vand.u32 %v421, 127
        %v423 = vadd.s32 %v422, 128
        %vm424 = vcmp.lt.s32.totalorder %v422, 0
        %v425 = vsub.s32 0, %v422
        %v426 = vsel %vm424, %v425, %v422
        %v427 = vshrl.u32 %v426, 4
        %v428 = vand.u32 %v426, 15
        %v429 = vsub.s32 0, %v428
        %v430 = vsel %vm424, %v429, %v428
        %vm431 = vcmp.lt.s32.totalorder %v423, 0
        %v432 = vsub.s32 0, %v423
        %v433 = vsel %vm431, %v432, %v423
        %v434 = vshrl.u32 %v433, 4
        %v435 = vand.u32 %v433, 15
        %v436 = vsub.s32 0, %v435
        %v437 = vsel %vm431, %v436, %v435
        %vm438 = vcmp.ne.s32.totalorder %v430, 0
        %vm439 = vcmp.ne.s32.totalorder %v437, 0
        %vm440 = vcmp.lt.s32.totalorder %v430, 0
        %vm441 = vcmp.lt.s32.totalorder %v437, 0
        %vm442 = vmand %vm440, %vm438
        %vm443 = vmand %vm441, %vm439
        %v444 = vadd.s32 %v430, 16
        %v445 = vadd.s32 %v437, 16
        %v446 = vsel %vm442, %v444, %v430
        %v447 = vsel %vm443, %v445, %v437
        %449 = vset.pattern.permute.xlu0 0
        %450 = vperm.xlu0 %449, %v381
        %v451 = vpop.permute.xlu0 %450
        %454 = vset.pattern.permute.xlu0 0
        %455 = vperm.xlu0 %454, %v382
        %v456 = vpop.permute.xlu0 %455
        %v458 = vmul.f32 %v402, %v451
        %v459 = vmul.f32 %v396, %v451
        %v460 = vmul.f32 %v403, %v456
        %v461 = vmul.f32 %v397, %v456
        %v462 = vadd.f32 %v458, 0.0
        %v463 = vadd.f32 %v459, 0.0
        %v464 = vadd.f32 %v460, 0.0
        %v465 = vadd.f32 %v461, 0.0
        %466 = vset.pattern.permute.xlu0 3
        %467 = vperm.xlu0 %466, %v381
        %v468 = vpop.permute.xlu0 %467
        %470 = vset.pattern.permute.xlu0 3
        %471 = vperm.xlu0 %470, %v382
        %v472 = vpop.permute.xlu0 %471
        %v474 = vmul.f32 %v377, %v468
        %v475 = vmul.f32 %v378, %v468
        %v476 = vmul.f32 %v379, %v472
        %v477 = vmul.f32 %v380, %v472
        %v478 = vadd.f32 %v462, %v474
        %v479 = vadd.f32 %v463, %v475
        %v480 = vadd.f32 %v464, %v476
        %v481 = vadd.f32 %v465, %v477
        %482 = vset.pattern.permute.xlu0 6
        %483 = vperm.xlu0 %482, %v381
        %v484 = vpop.permute.xlu0 %483
        %486 = vset.pattern.permute.xlu0 6
        %487 = vperm.xlu0 %486, %v382
        %v488 = vpop.permute.xlu0 %487
        %v490 = vmul.f32 %v413, %v484
        %v491 = vmul.f32 %v419, %v484
        %v492 = vmul.f32 %v414, %v488
        %v493 = vmul.f32 %v420, %v488
        %v494 = vadd.f32 %v478, %v490
        %v495 = vadd.f32 %v479, %v491
        %v496 = vadd.f32 %v480, %v492
        %v497 = vadd.f32 %v481, %v493
        %502 = vrot.lane.b32.xlu0 %v494, 1
        %v503 = vpop.permute.xlu0 %502
        %504 = vrot.lane.b32.xlu0 %v495, 1
        %v505 = vpop.permute.xlu0 %504
        %506 = vrot.lane.b32.xlu0 %v496, 1
        %v507 = vpop.permute.xlu0 %506
        %508 = vrot.lane.b32.xlu0 %v497, 1
        %v509 = vpop.permute.xlu0 %508
        %vm510 = vcmask 7168
        %v511 = vsel %vm510, %v503, %v505
        %v512 = vsel %vm510, %v507, %v509
        %v517 = vsel %vm510, 0.0, %v503
        %v518 = vsel %vm510, 0.0, %v507
        %vm519 = vcmp.ge.s32.totalorder %v446, 1
        %vm520 = vcmp.ge.s32.totalorder %v447, 1
        %v521 = vsel %vm519, 1, 0
        %v522 = vsel %vm520, 1, 0
        %vm523 = vcmp.eq.s32.totalorder %v521, 1
        %vm524 = vcmp.eq.s32.totalorder %v522, 1
        %v525 = vsel %vm523, %v517, 0.0
        %v526 = vsel %vm524, %v511, 0.0
        %v527 = vsel %vm523, %v518, 0.0
        %v528 = vsel %vm524, %v512, 0.0
        %v529 = vadd.f32 %v525, 0.0
        %v530 = vadd.f32 %v526, 0.0
        %v531 = vadd.f32 %v527, 0.0
        %v532 = vadd.f32 %v528, 0.0
        %533 = vset.pattern.permute.xlu0 1
        %534 = vperm.xlu0 %533, %v381
        %v535 = vpop.permute.xlu0 %534
        %537 = vset.pattern.permute.xlu0 1
        %538 = vperm.xlu0 %537, %v382
        %v539 = vpop.permute.xlu0 %538
        %v541 = vmul.f32 %v402, %v535
        %v542 = vmul.f32 %v396, %v535
        %v543 = vmul.f32 %v403, %v539
        %v544 = vmul.f32 %v397, %v539
        %v545 = vadd.f32 %v541, 0.0
        %v546 = vadd.f32 %v542, 0.0
        %v547 = vadd.f32 %v543, 0.0
        %v548 = vadd.f32 %v544, 0.0
        %549 = vset.pattern.permute.xlu0 4
        %550 = vperm.xlu0 %549, %v381
        %v551 = vpop.permute.xlu0 %550
        %553 = vset.pattern.permute.xlu0 4
        %554 = vperm.xlu0 %553, %v382
        %v555 = vpop.permute.xlu0 %554
        %v557 = vmul.f32 %v377, %v551
        %v558 = vmul.f32 %v378, %v551
        %v559 = vmul.f32 %v379, %v555
        %v560 = vmul.f32 %v380, %v555
        %v561 = vadd.f32 %v545, %v557
        %v562 = vadd.f32 %v546, %v558
        %v563 = vadd.f32 %v547, %v559
        %v564 = vadd.f32 %v548, %v560
        %565 = vset.pattern.permute.xlu0 7
        %566 = vperm.xlu0 %565, %v381
        %v567 = vpop.permute.xlu0 %566
        %569 = vset.pattern.permute.xlu0 7
        %570 = vperm.xlu0 %569, %v382
        %v571 = vpop.permute.xlu0 %570
        %v573 = vmul.f32 %v413, %v567
        %v574 = vmul.f32 %v419, %v567
        %v575 = vmul.f32 %v414, %v571
        %v576 = vmul.f32 %v420, %v571
        %v577 = vadd.f32 %v561, %v573
        %v578 = vadd.f32 %v562, %v574
        %v579 = vadd.f32 %v563, %v575
        %v580 = vadd.f32 %v564, %v576
        %v581 = vadd.f32 %v529, %v577
        %v582 = vadd.f32 %v530, %v578
        %v583 = vadd.f32 %v531, %v579
        %v584 = vadd.f32 %v532, %v580
        %585 = vset.pattern.permute.xlu0 2
        %586 = vperm.xlu0 %585, %v381
        %v587 = vpop.permute.xlu0 %586
        %589 = vset.pattern.permute.xlu0 2
        %590 = vperm.xlu0 %589, %v382
        %v591 = vpop.permute.xlu0 %590
        %v593 = vmul.f32 %v402, %v587
        %v594 = vmul.f32 %v396, %v587
        %v595 = vmul.f32 %v403, %v591
        %v596 = vmul.f32 %v397, %v591
        %v597 = vadd.f32 %v593, 0.0
        %v598 = vadd.f32 %v594, 0.0
        %v599 = vadd.f32 %v595, 0.0
        %v600 = vadd.f32 %v596, 0.0
        %601 = vset.pattern.permute.xlu0 5
        %602 = vperm.xlu0 %601, %v381
        %v603 = vpop.permute.xlu0 %602
        %605 = vset.pattern.permute.xlu0 5
        %606 = vperm.xlu0 %605, %v382
        %v607 = vpop.permute.xlu0 %606
        %v609 = vmul.f32 %v377, %v603
        %v610 = vmul.f32 %v378, %v603
        %v611 = vmul.f32 %v379, %v607
        %v612 = vmul.f32 %v380, %v607
        %v613 = vadd.f32 %v597, %v609
        %v614 = vadd.f32 %v598, %v610
        %v615 = vadd.f32 %v599, %v611
        %v616 = vadd.f32 %v600, %v612
        %617 = vset.pattern.permute.xlu0 8
        %618 = vperm.xlu0 %617, %v381
        %v619 = vpop.permute.xlu0 %618
        %621 = vset.pattern.permute.xlu0 8
        %622 = vperm.xlu0 %621, %v382
        %v623 = vpop.permute.xlu0 %622
        %v625 = vmul.f32 %v413, %v619
        %v626 = vmul.f32 %v419, %v619
        %v627 = vmul.f32 %v414, %v623
        %v628 = vmul.f32 %v420, %v623
        %v629 = vadd.f32 %v613, %v625
        %v630 = vadd.f32 %v614, %v626
        %v631 = vadd.f32 %v615, %v627
        %v632 = vadd.f32 %v616, %v628
        %637 = vrot.lane.b32.xlu0 %v629, 127
        %v638 = vpop.permute.xlu0 %637
        %639 = vrot.lane.b32.xlu0 %v630, 127
        %v640 = vpop.permute.xlu0 %639
        %641 = vrot.lane.b32.xlu0 %v631, 127
        %v642 = vpop.permute.xlu0 %641
        %643 = vrot.lane.b32.xlu0 %v632, 127
        %v644 = vpop.permute.xlu0 %643
        %vm645 = vcmask 1039360
        %v646 = vsel %vm645, %v638, %v640
        %v647 = vsel %vm645, %v642, %v644
        %v652 = vsel %vm645, %v640, 0.0
        %v653 = vsel %vm645, %v644, 0.0
        %vm654 = vcmp.le.s32.totalorder %v446, 14
        %vm655 = vcmp.le.s32.totalorder %v447, 14
        %v656 = vsel %vm654, 1, 0
        %v657 = vsel %vm655, 1, 0
        %vm658 = vcmp.eq.s32.totalorder %v656, 1
        %vm659 = vcmp.eq.s32.totalorder %v657, 1
        %v660 = vsel %vm658, %v646, 0.0
        %v661 = vsel %vm659, %v652, 0.0
        %v662 = vsel %vm658, %v647, 0.0
        %v663 = vsel %vm659, %v653, 0.0
        %v664 = vadd.f32 %v581, %v660
        %v665 = vadd.f32 %v582, %v661
        %v666 = vadd.f32 %v583, %v662
        %v667 = vadd.f32 %v584, %v663
        %v668 = vld [vmem:[%s4] sm:$0xff]
        %v669 = vld [vmem:[%s4 + $0x8] sm:$0xff]
        %671 = vset.pattern.permute.xlu0 0
        %672 = vperm.xlu0 %671, %v668
        %v673 = vpop.permute.xlu0 %672
        %676 = vset.pattern.permute.xlu0 0
        %677 = vperm.xlu0 %676, %v669
        %v678 = vpop.permute.xlu0 %677
        %v680 = vadd.f32 %v664, %v673
        %v681 = vadd.f32 %v665, %v673
        %v682 = vadd.f32 %v666, %v678
        %v683 = vadd.f32 %v667, %v678
        %v684 = vmax.f32 %v680, 0.0
        %v685 = vmax.f32 %v681, 0.0
        %v686 = vmax.f32 %v682, 0.0
        %v687 = vmax.f32 %v683, 0.0
        %v688 = vld [vmem:[%s5] sm:$0xff]
        %v689 = vld [vmem:[%s6] sm:$0xff]
        %691 = vset.pattern.permute.xlu0 0
        %692 = vperm.xlu0 %691, %v689
        %v693 = vpop.permute.xlu0 %692
        %v696 = vsel %vm395, %v688, 0
        %698 = vmatprep.subr.mxu0 0.0
        %699 = vmatpush1.msra.mxu0 0.0
        %700 = vmatprep.subr.mxu0 0.0
        %701 = vmatpush1.msra.mxu0 0.0
        %702 = vmatprep.subr.mxu0 0.0
        %703 = vmatpush1.msra.mxu0 0.0
        %704 = vmatprep.subr.mxu0 0.0
        %705 = vmatpush1.msra.mxu0 0.0
        %706 = vmatprep.subr.mxu0 0.0
        %707 = vmatpush1.msra.mxu0 0.0
        %708 = vmatprep.subr.mxu0 0.0
        %709 = vmatpush1.msra.mxu0 0.0
        %710 = vmatprep.subr.mxu0 0.0
        %711 = vmatpush1.msra.mxu0 0.0
        %712 = vmatprep.subr.mxu0 0.0
        %713 = vmatpush1.msra.mxu0 0.0
        %714 = vmatprep.subr.mxu0 0.0
        %715 = vmatpush1.msra.mxu0 0.0
        %716 = vmatprep.subr.mxu0 0.0
        %717 = vmatpush1.msra.mxu0 0.0
        %718 = vmatprep.subr.mxu0 0.0
        %719 = vmatpush1.msra.mxu0 0.0
        %720 = vmatprep.subr.mxu0 0.0
        %721 = vmatpush1.msra.mxu0 0.0
        %722 = vmatprep.subr.mxu0 0.0
        %723 = vmatpush1.msra.mxu0 0.0
        %724 = vmatprep.subr.mxu0 0.0
        %725 = vmatpush1.msra.mxu0 0.0
        %726 = vmatprep.subr.mxu0 %v687
        %727 = vmatpush1.msra.mxu0 %v686
        %728 = vmatprep.subr.mxu0 %v685
        %729 = vmatpush1.msra.mxu0 %v684
        %730 = vmatprep.subr.mxu0 0.0
        %731 = vmatpush2.msra.mxu0 0.0
        %732 = vmatprep.subr.mxu0 0.0
        %733 = vmatpush2.msra.mxu0 0.0
        %734 = vmatprep.subr.mxu0 0.0
        %735 = vmatpush2.msra.mxu0 0.0
        %736 = vmatprep.subr.mxu0 0.0
        %737 = vmatpush2.msra.mxu0 0.0
        %738 = vmatprep.subr.mxu0 0.0
        %739 = vmatpush2.msra.mxu0 0.0
        %740 = vmatprep.subr.mxu0 0.0
        %741 = vmatpush2.msra.mxu0 0.0
        %742 = vmatprep.subr.mxu0 0.0
        %743 = vmatpush2.msra.mxu0 0.0
        %744 = vmatprep.subr.mxu0 0.0
        %745 = vmatpush2.msra.mxu0 0.0
        %746 = vmatprep.subr.mxu0 0.0
        %747 = vmatpush2.msra.mxu0 0.0
        %748 = vmatprep.subr.mxu0 0.0
        %749 = vmatpush2.msra.mxu0 0.0
        %750 = vmatprep.subr.mxu0 0.0
        %751 = vmatpush2.msra.mxu0 0.0
        %752 = vmatprep.subr.mxu0 0.0
        %753 = vmatpush2.msra.mxu0 0.0
        %754 = vmatprep.subr.mxu0 0.0
        %755 = vmatpush2.msra.mxu0 0.0
        %756 = vmatprep.subr.mxu0 0.0
        %757 = vmatpush2.msra.mxu0 0.0
        %758 = vmatprep.subr.mxu0 0.0
        %759 = vmatpush2.msra.mxu0 0.0
        %760 = vmatprep.subr.mxu0 0.0
        %761 = vmatpush2.msra.mxu0 0.0
        %762 = vmatprep.mubr.f32.mxu0 0.0
        %763 = vmatmul.mubr.f32.gmra.mxu0 %v696
        %v764 = vpop.f32.mrf.mxu0
        %v765 = vadd.f32 %v693, %v764
        %v766 = vpop.f32.mrf.mxu0
        %v767 = vadd.f32 %v693, %v766
        %768 = vdwg.mxu0
        %v769 = vadd.f32 %v765, %v277
        %v770 = vadd.f32 %v767, %v278
        %771 = vst [vmem:[%s271] sm:$0xff] %v769
        %772 = vst [vmem:[%s271 + $0x8] sm:$0xff] %v770
        %s773 = sand.u32 %s181, 1
        %s774 = scalar_lea.sflag [#allocation3], %s773
        %s775 = sand.u32 %s181, 1
        %s776 = smul.addr %s775, 16
        %s777 = scalar_lea.vmem [#allocation2], %s776
        // Predicated region
        $region49: #{tpu_custom_call.1} parent=47 // pred_check
          %p778 = pneg %p191
        $region50: #{tpu_custom_call.1} parent=47 // pred_check_branch
          %780 = sbr.rel (%p778) target = $region52
        $region51: #{tpu_custom_call.1} parent=47 // pred_region
          %s782 = ssub.s32 256, 256
          %783 = vsyncadd %s774, %s782
          %s784 = smul.addr %s21, 2
          %s785 = smul.addr %s784, 128
          %s786 = scalar_lea.hbm %s7, %s785
          %s788 = sshll.u32 %s777, 4
          %s789 = int_to_ptr.vmem [resolvable:$true] %s788
          %791 = dma.vmem_to_hbm [thread:$0]  %s789, 256, %s786, %s774
        $region52: #{tpu_custom_call.1} parent=47 // pred_fallthru
          _
      $region48: #{tpu_custom_call.1} parent=5 // pred_fallthru
        _
      %p792 = scmp.le.s32.totalorder 2, %s16
      // Predicated region
      $region53: #{tpu_custom_call.1} parent=5 // pred_check
        %p793 = pneg %p792
      $region54: #{tpu_custom_call.1} parent=5 // pred_check_branch
        %795 = sbr.rel (%p793) target = $region56
      $region55: #{tpu_custom_call.1} parent=5 // pred_region
        %s796 = ssub.s32 %s16, 2
        // Predicated region
        $region57: #{tpu_custom_call.1} parent=55 // pred_check
          %p797 = pneg %p197
        $region58: #{tpu_custom_call.1} parent=55 // pred_check_branch
          %799 = sbr.rel (%p797) target = $region60
        $region59: #{tpu_custom_call.1} parent=55 // pred_region
          %s800 = sand.u32 %s182, 1
          %s801 = scalar_lea.sflag [#allocation3], %s800
          %s802 = sand.u32 %s182, 1
          %s803 = smul.addr %s802, 16
          %s804 = scalar_lea.vmem [#allocation2], %s803
          %805 = dma.done %s801, 256
        $region60: #{tpu_custom_call.1} parent=55 // pred_fallthru
          _
      $region56: #{tpu_custom_call.1} parent=5 // pred_fallthru
        _
    $region6: #{tpu_custom_call.1} parent=1 // loop_footer
      %s20 = sadd.s32 1, %s16
    $region7: #{tpu_custom_call.1} parent=1 // loop_footer_branch
      %15 = sbr.rel target = $region3
    $region8: #{tpu_custom_call.1} parent=1 // loop_exit
      _
    %806 = vsyncpa [#allocation3], 1
    %s807 = scalar_lea.sflag [#allocation3], 1
    %808 = vsyncpa %s807, 1

</llo_original>
